<compile_context>
chip_gen: v6e
topology: v6e:2x2x1
jax: 0.10.0
libtpu: 0.0.40
codegen_flags: <defaults>
</compile_context>

<pallas_src>
import functools

import jax
import jax.numpy as jnp
from jax.experimental import pallas as pl
from jax.experimental.pallas import tpu as pltpu

TARGET_SIZE = 11   # CFG.target_size
LANE = 128         # TPU lane width; FC output padded to this


def _head_kernel(feat_ref, w_ref, b_ref, pooled_ref, logits_ref, *,
                 inv_s, s, ct, cg, lane):
    """One grid step: (Bt, Ct, S) NCHW feature tile -> pooled tile + partial FC.

    Grid = (G, B//Bt, Cg//Ct). The logits block index (b, g) is constant over
    the channel-chunk axis, so the block stays VMEM-resident and is used
    directly as the FC accumulator (bias written at c == 0, no scratch).
    """
    g = pl.program_id(0)
    c = pl.program_id(2)

    @pl.when(c == 0)
    def _init():
        # Bias is contributed exactly once (by channel-group 0); other groups
        # start from zero and are summed with group 0 in the wrapper.
        bias = jnp.broadcast_to(b_ref[...], logits_ref.shape)
        logits_ref[...] = bias * (g == 0).astype(jnp.float32)

    # Global average pool over the spatial (lane) axis with f32 accumulation,
    # scaled by a hoisted 1/S constant. When S is a 128-multiple, do strip adds
    # on the VALU and a single cross-lane (XLU) reduce; else plain sum.
    if s % lane == 0 and s > lane:
        acc = feat_ref[:, :, 0:lane].astype(jnp.float32)
        for k in range(1, s // lane):
            acc = acc + feat_ref[:, :, k * lane:(k + 1) * lane].astype(jnp.float32)
    else:
        acc = feat_ref[...].astype(jnp.float32)
    pooled = jnp.sum(acc, axis=-1) * inv_s                      # (Bt, Ct) f32
    pooled_ref[...] = pooled

    # Partial FC for this channel chunk. The weight block (Cg, LANE) is
    # VMEM-resident (index_map invariant over b and c): slice, don't re-DMA.
    if ct == cg:
        w = w_ref[...]
    else:
        start = pl.multiple_of(c * ct, ct)
        w = w_ref[pl.ds(start, ct), :]
    logits_ref[...] += jnp.dot(pooled, w, preferred_element_type=jnp.float32)


def _divisors_desc(n):
    return [d for d in range(n, 0, -1) if n % d == 0]


def _feature_block_cap_bytes():
    """Generation-aware cap on the (Bt, Ct, S) feature block."""
    try:
        info = pltpu.get_tpu_info()
        vmem_bytes = int(getattr(info, "vmem_capacity_bytes", 64 * 1024 * 1024))
    except Exception:
        vmem_bytes = 64 * 1024 * 1024
    if vmem_bytes >= 96 * 1024 * 1024:      # v5e / v6e: 128 MiB physical VMEM
        return 28 * 1024 * 1024, vmem_bytes
    return 14 * 1024 * 1024, vmem_bytes     # v7x: 64 MiB per TensorCore


def _choose_tiles(B, Cg, S, itemsize, cap_bytes):
    """Largest (Bt, Ct) with Bt | B (Bt <= 8), Ct | Cg (full group or a
    128-aligned divisor), and a (Bt, Ct, S) feature block under cap_bytes.
    Prefers shrinking the channel tile before the batch tile."""
    bt_cands = [d for d in _divisors_desc(B) if d <= 8] or [1]
    ct_cands = [Cg] + [d for d in _divisors_desc(Cg) if d % 128 == 0 and d < Cg]
    for bt in bt_cands:
        for ct in ct_cands:
            if bt * ct * S * itemsize <= cap_bytes:
                return bt, ct
    # Pathological fallback (huge spatial map): smallest legal block.
    return bt_cands[-1], ct_cands[-1]


def prepare_fc_params(fc_w, fc_b):
    """Pad nn.Linear(num_ftrs, target_size) params to the 128-lane width.

    Hoisted out of the per-forward path (compute once per weight set); zero
    padding, so padded lanes never leak into the real logits.
    """
    c, t = fc_w.shape
    w_pad = jnp.zeros((c, LANE), jnp.float32).at[:, :t].set(fc_w.astype(jnp.float32))
    b_pad = jnp.zeros((1, LANE), jnp.float32).at[:, :t].set(fc_b.astype(jnp.float32))
    return w_pad, b_pad


def custom_model_forward(x_nchw, w_pad, b_pad, target_size=TARGET_SIZE):
    """Pool + FC head of CustomModel.

    x_nchw: [B, C, H, W] backbone feature map (Identity backbone here); bf16
            (autocast-style) or f32.
    w_pad:  [C, 128] zero-padded FC weight, b_pad: [1, 128] zero-padded bias
            (see prepare_fc_params).
    Returns (features, pooled_features, output) like the PyTorch forward.
    """
    B, C, H, W = x_nchw.shape
    S = H * W

    # Merging the two contiguous minor dims (H, W) -> S is a free,
    # layout-preserving reshape: no transpose, no extra HBM pass.
    feat = x_nchw.reshape(B, C, S)
    itemsize = jnp.dtype(feat.dtype).itemsize

    cap_bytes, vmem_bytes = _feature_block_cap_bytes()

    # Small-batch core split: if the batch axis cannot provide >= 2 parallel
    # grid steps, split the channel axis into two lane-aligned groups so v7x's
    # second TensorCore has work; each group emits partial logits summed in the
    # wrapper. Costs ~nothing on single-core parts (v5e/v6e).
    bt_full = ([d for d in _divisors_desc(B) if d <= 8] or [1])[0]
    G = 2 if (B // bt_full < 2 and C % 256 == 0 and C >= 256) else 1
    Cg = C // G

    Bt, Ct = _choose_tiles(B, Cg, S, itemsize, cap_bytes)
    n_c = Cg // Ct
    grid = (G, B // Bt, n_c)

    feat_block_bytes = Bt * Ct * S * itemsize
    vmem_need = (2 * feat_block_bytes            # double-buffered feature stream
                 + 2 * Cg * LANE * 4             # resident FC weight block
                 + 2 * Bt * Ct * 4               # pooled output blocks
                 + 2 * Bt * LANE * 4             # resident logits accumulator
                 + (2 << 20))                    # bias + misc headroom
    vmem_limit = int(max(32 * 1024 * 1024, vmem_need))
    vmem_limit = int(min(vmem_limit, max(vmem_need, vmem_bytes - (8 << 20))))

    kernel = functools.partial(_head_kernel, inv_s=float(1.0 / S), s=S,
                               ct=Ct, cg=Cg, lane=LANE)

    pooled, logits_pad = pl.pallas_call(
        kernel,
        out_shape=(
            jax.ShapeDtypeStruct((B, C), jnp.float32),
            jax.ShapeDtypeStruct((B, G * LANE), jnp.float32),
        ),
        grid_spec=pltpu.PrefetchScalarGridSpec(
            num_scalar_prefetch=0,
            grid=grid,
            in_specs=[
                # NCHW feature tile for (group g, batch tile b, channel chunk c).
                pl.BlockSpec((Bt, Ct, S), lambda g, b, c: (b, g * n_c + c, 0)),
                # FC weight: one (Cg, LANE) block per group, VMEM-resident
                # across the batch and channel-chunk grid axes.
                pl.BlockSpec((Cg, LANE), lambda g, b, c: (g, 0)),
                # FC bias (padded), fully resident.
                pl.BlockSpec((1, LANE), lambda g, b, c: (0, 0)),
            ],
            out_specs=[
                # Pooled features.
                pl.BlockSpec((Bt, Ct), lambda g, b, c: (b, g * n_c + c)),
                # Per-group partial logits; block index constant over c, so the
                # block stays resident and doubles as the FC accumulator.
                pl.BlockSpec((Bt, LANE), lambda g, b, c: (b, g)),
            ],
        ),
        compiler_params=pltpu.CompilerParams(
            dimension_semantics=("parallel", "parallel", "arbitrary"),
            vmem_limit_bytes=vmem_limit),
    )(feat, w_pad, b_pad)

    if G > 1:
        logits_full = logits_pad.reshape(B, G, LANE).sum(axis=1)
    else:
        logits_full = logits_pad
    logits = logits_full[:, :target_size]

    features = x_nchw          # Identity backbone (see TODO above)
    # Pooled features kept in f32 (an autocast forward would hand back bf16;
    # interface-only difference, numerically a strict superset).
    return features, pooled, logits


if __name__ == "__main__":
    key = jax.random.PRNGKey(0)
    k_x, k_w, k_b = jax.random.split(key, 3)

    # Small stand-in for the resnet200d feature map (real: num_ftrs=2048,
    # 20x20 @ size=640): batch=2, channels=256, spatial 16x16. Channels are
    # lane-aligned so the small-batch dual-group path is exercised.
    B, C, H, W = 2, 256, 16, 16
    # autocast-style bf16 feature map (halves HBM read bytes in the kernel).
    x = jax.random.normal(k_x, (B, C, H, W), dtype=jnp.float32).astype(jnp.bfloat16)

    # Deterministic nn.Linear(num_ftrs, 11)-style init (uniform +-1/sqrt(C)).
    bound = 1.0 / float(C) ** 0.5
    fc_w = jax.random.uniform(k_w, (C, TARGET_SIZE), jnp.float32, -bound, bound)
    fc_b = jax.random.uniform(k_b, (TARGET_SIZE,), jnp.float32, -bound, bound)

    w_pad, b_pad = prepare_fc_params(fc_w, fc_b)   # hoisted out of the forward
    feats, pooled, out = custom_model_forward(x, w_pad, b_pad)
    jax.block_until_ready((feats, pooled, out))

    # Pure-JAX reference on the same bf16 inputs with f32 accumulation.
    ref_pooled = jnp.mean(x.astype(jnp.float32), axis=(2, 3))
    ref_logits = ref_pooled @ fc_w + fc_b

    assert feats.shape == (B, C, H, W)
    assert pooled.shape == (B, C)
    assert out.shape == (B, TARGET_SIZE)
    assert jnp.allclose(pooled, ref_pooled, atol=1e-4, rtol=1e-4)
    assert jnp.allclose(out, ref_logits, atol=1e-3, rtol=1e-3)

    print("KERNEL_OK")
</pallas_src>

<mosaic_0001>
module attributes {stable_mosaic.version = 11 : i64} {
  func.func @_head_kernel(%arg0: i32, %arg1: i32, %arg2: i32, %arg3: memref<2x128x256xbf16, #tpu.memory_space<vmem>>, %arg4: memref<128x128xf32, #tpu.memory_space<vmem>>, %arg5: memref<1x128xf32, #tpu.memory_space<vmem>>, %arg6: memref<2x128xf32, #tpu.memory_space<vmem>>, %arg7: memref<2x128xf32, #tpu.memory_space<vmem>>) attributes {dimension_semantics = [#tpu.dimension_semantics<parallel>, #tpu.dimension_semantics<parallel>, #tpu.dimension_semantics<arbitrary>], iteration_bounds = array<i64: 2, 1, 1>, scalar_prefetch = 0 : i64, scratch_operands = 0 : i64, tpu.core_type = #tpu.core_type<tc>, window_params = [{transform_indices = @transform_0, window_bounds = array<i64: 2, 128, 256>}, {transform_indices = @transform_1, window_bounds = array<i64: 128, 128>}, {pipeline_mode = #tpu.pipeline_mode<synchronous>, transform_indices = @transform_2, window_bounds = array<i64: 1, 128>}, {transform_indices = @transform_3, window_bounds = array<i64: 2, 128>}, {transform_indices = @transform_4, window_bounds = array<i64: 2, 128>}]} {
    %c0_i32 = arith.constant 0 : i32
    %0 = arith.cmpi eq, %arg2, %c0_i32 : i32
    %1 = arith.extui %0 : i1 to i32
    %c0_i32_0 = arith.constant 0 : i32
    %2 = arith.cmpi ne, %1, %c0_i32_0 : i32
    scf.if %2 {
      %c0_15 = arith.constant 0 : index
      %c0_16 = arith.constant 0 : index
      %17 = vector.load %arg5[%c0_15, %c0_16] : memref<1x128xf32, #tpu.memory_space<vmem>>, vector<1x128xf32>
      %18 = vector.shape_cast %17 : vector<1x128xf32> to vector<1x128xf32>
      %19 = vector.broadcast %18 : vector<1x128xf32> to vector<2x128xf32>
      %c0_i32_17 = arith.constant 0 : i32
      %20 = arith.cmpi eq, %arg0, %c0_i32_17 : i32
      %21 = arith.extui %20 : i1 to i32
      %22 = arith.sitofp %21 : i32 to f32
      %23 = vector.broadcast %22 : f32 to vector<2x128xf32>
      %24 = arith.mulf %19, %23 : vector<2x128xf32>
      %c0_18 = arith.constant 0 : index
      %c0_19 = arith.constant 0 : index
      %25 = vector.load %arg7[%c0_18, %c0_19] : memref<2x128xf32, #tpu.memory_space<vmem>>, vector<2x128xf32>
      tpu.vector_store %arg7[%c0_18, %c0_19], %24 {strides = array<i32>} : memref<2x128xf32, #tpu.memory_space<vmem>>, vector<2x128xf32>,
    } else {
    }
    %c0 = arith.constant 0 : index
    %c0_1 = arith.constant 0 : index
    %c0_2 = arith.constant 0 : index
    %3 = vector.load %arg3[%c0, %c0_1, %c0_2] : memref<2x128x256xbf16, #tpu.memory_space<vmem>>, vector<2x128x128xbf16>
    %4 = arith.extf %3 : vector<2x128x128xbf16> to vector<2x128x128xf32>
    %c0_3 = arith.constant 0 : index
    %c0_4 = arith.constant 0 : index
    %c128 = arith.constant 128 : index
    %5 = vector.load %arg3[%c0_3, %c0_4, %c128] : memref<2x128x256xbf16, #tpu.memory_space<vmem>>, vector<2x128x128xbf16>
    %6 = arith.extf %5 : vector<2x128x128xbf16> to vector<2x128x128xf32>
    %7 = arith.addf %4, %6 : vector<2x128x128xf32>
    %cst = arith.constant dense<0.000000e+00> : vector<2x128xf32>
    %8 = vector.multi_reduction <add>, %7, %cst [2] : vector<2x128x128xf32> to vector<2x128xf32>
    %cst_5 = arith.constant 3.906250e-03 : f32
    %9 = vector.broadcast %cst_5 : f32 to vector<2x128xf32>
    %10 = arith.mulf %8, %9 : vector<2x128xf32>
    %c0_6 = arith.constant 0 : index
    %c0_7 = arith.constant 0 : index
    %11 = vector.load %arg6[%c0_6, %c0_7] : memref<2x128xf32, #tpu.memory_space<vmem>>, vector<2x128xf32>
    tpu.vector_store %arg6[%c0_6, %c0_7], %10 {strides = array<i32>} : memref<2x128xf32, #tpu.memory_space<vmem>>, vector<2x128xf32>,
    %c0_8 = arith.constant 0 : index
    %c0_9 = arith.constant 0 : index
    %12 = vector.load %arg4[%c0_8, %c0_9] : memref<128x128xf32, #tpu.memory_space<vmem>>, vector<128x128xf32>
    %c0_10 = arith.constant 0 : index
    %c0_11 = arith.constant 0 : index
    %13 = vector.load %arg7[%c0_10, %c0_11] : memref<2x128xf32, #tpu.memory_space<vmem>>, vector<2x128xf32>
    %cst_12 = arith.constant dense<0.000000e+00> : vector<2x128xf32>
    %14 = tpu.matmul %10, %12, %cst_12 {dimension_numbers = #tpu.dot_dimension_numbers<[1], [0], [0], [1], [0, 0, 1, 1], [], []>} : vector<2x128xf32>, vector<128x128xf32>, vector<2x128xf32> -> vector<2x128xf32>
    %15 = arith.addf %13, %14 : vector<2x128xf32>
    %c0_13 = arith.constant 0 : index
    %c0_14 = arith.constant 0 : index
    %16 = vector.load %arg7[%c0_13, %c0_14] : memref<2x128xf32, #tpu.memory_space<vmem>>, vector<2x128xf32>
    tpu.vector_store %arg7[%c0_13, %c0_14], %15 {strides = array<i32>} : memref<2x128xf32, #tpu.memory_space<vmem>>, vector<2x128xf32>,
    return
  }
  func.func @transform_0(%arg0: i32, %arg1: i32, %arg2: i32) -> (i32, i32, i32) {
    %c1_i32 = arith.constant 1 : i32
    %0 = arith.muli %arg0, %c1_i32 : i32
    %1 = arith.addi %0, %arg2 : i32
    %c0_i32 = arith.constant 0 : i32
    %c0_i32_0 = arith.constant 0 : i32
    return %arg1, %1, %c0_i32 : i32, i32, i32
  }
  func.func @transform_1(%arg0: i32, %arg1: i32, %arg2: i32) -> (i32, i32) {
    %c0_i32 = arith.constant 0 : i32
    %c0_i32_0 = arith.constant 0 : i32
    return %arg0, %c0_i32 : i32, i32
  }
  func.func @transform_2(%arg0: i32, %arg1: i32, %arg2: i32) -> (i32, i32) {
    %c0_i32 = arith.constant 0 : i32
    %c0_i32_0 = arith.constant 0 : i32
    %c0_i32_1 = arith.constant 0 : i32
    return %c0_i32, %c0_i32_0 : i32, i32
  }
  func.func @transform_3(%arg0: i32, %arg1: i32, %arg2: i32) -> (i32, i32) {
    %c1_i32 = arith.constant 1 : i32
    %0 = arith.muli %arg0, %c1_i32 : i32
    %1 = arith.addi %0, %arg2 : i32
    %c0_i32 = arith.constant 0 : i32
    return %arg1, %1 : i32, i32
  }
  func.func @transform_4(%arg0: i32, %arg1: i32, %arg2: i32) -> (i32, i32) {
    %c0_i32 = arith.constant 0 : i32
    return %arg1, %arg0 : i32, i32
  }
}

</mosaic_0001>

<llo_original>
// kernel: tpu_custom_call.1
$region0: #{tpu_custom_call.1}
  #allocation0 [shape = 'u32[]', space=smem, size = 0x4, offset = 0x4, fixed_abs, tag = 'smem constant byte address 0x4 - core index']
  #allocation1 [shape = 'u32[144,128]{1,0:T(1,128)}', space=vmem, size = 0x12000, scoped, tag = 'internal scratch']
  #allocation10 [shape = 's32[]', space=sflag, size = 0x4, offset = 0, fixed_abs, tag = 'sflag constant byte address 0x0 - dummy sync flag']
  %s0 = inlined_call_operand.hbm [shape: bf16[2,256,256], index: 0, kind: input, shape index: {}]
  %s1 = inlined_call_operand.hbm [shape: f32[256,128], index: 1, kind: input, shape index: {}]
  %s2 = inlined_call_operand.vmem [shape: f32[1,128], index: 2, kind: input, shape index: {}]
  %s3 = inlined_call_operand.hbm [shape: f32[2,256], index: 3, kind: output, shape index: {0}]
  %s4 = inlined_call_operand.hbm [shape: f32[2,256], index: 4, kind: output, shape index: {1}]
  %5 = xla_tuple %s3, %s4
  %s6 = sld [smem:[#allocation0]]
  $region65: #{tpu_custom_call.1} parent=0
    _
  %s8 = ssub.s32 1, %s6
  %s9 = scalar_select 0, %s8, %s6
  $region1: #{tpu_custom_call.1} parent=0
    #allocation2 [shape = 'u8[262144]{0}', space=vmem, size = 0x40000, scoped, tag = 'input window, operand 0']
    #allocation3 [shape = 's32[2]{0}', space=sflag, size = 0x8, scoped, tag = 'scoped memory for tpu_custom_call.1']
    #allocation4 [shape = 's32[2]{0}', space=sflag, size = 0x8, scoped, tag = 'scoped memory for tpu_custom_call.1']
    #allocation5 [shape = 'u8[131072]{0}', space=vmem, size = 0x20000, scoped, tag = 'input window, operand 1']
    #allocation6 [shape = 's32[2]{0}', space=sflag, size = 0x8, scoped, tag = 'scoped memory for tpu_custom_call.1']
    #allocation7 [shape = 'u8[2048]{0}', space=vmem, size = 0x800, scoped, tag = 'output window, operand 0']
    #allocation8 [shape = 'u8[2048]{0}', space=vmem, size = 0x800, scoped, tag = 'output window, operand 1']
    #allocation9 [shape = 's32[2]{0}', space=sflag, size = 0x8, scoped, tag = 'scoped memory for tpu_custom_call.1']
    %10 = vsyncpa [#allocation3], 0
    %s11 = scalar_lea.sflag [#allocation3], 1
    %12 = vsyncpa %s11, 0
    %13 = vsyncpa [#allocation6], 0
    %s14 = scalar_lea.sflag [#allocation6], 1
    %15 = vsyncpa %s14, 0
    %16 = vsyncpa [#allocation4], 0
    %s17 = scalar_lea.sflag [#allocation4], 1
    %18 = vsyncpa %s17, 0
    %19 = vsyncpa [#allocation9], 0
    %s20 = scalar_lea.sflag [#allocation9], 1
    %21 = vsyncpa %s20, 0
    loop: start=0, step=1, limit=4
    $region2: #{tpu_custom_call.1} parent=1 // loop_pre_header
      _
    $region3: #{tpu_custom_call.1} parent=1 // loop_header
      %s23 = sphi 0, %s27
      %p24 = scmp.ge.s32.totalorder %s23, 4
      %s30 = sphi 0, %s49
      %s31 = sphi 0, %s45
      %s32 = sphi 0, %s41
      %s33 = sphi 0, %s30
      %s34 = sphi 0, %s31
      %s35 = sphi 0, %s32
      %s36 = sphi 0, %s33
      %s37 = sphi 0, %s34
      %s38 = sphi 0, %s35
      %s56 = sphi 0, %s58
      %s59 = sphi 0, %s56
      %s60 = sphi 0, %s59
      %s76 = sphi 0, %s60
      %s82 = sphi 0, %s84
      %s85 = sphi 0, %s82
      %s86 = sphi 0, %s85
      %s102 = sphi 0, %s86
      %s106 = sphi 0, %s106
      %s108 = sphi 0, %s106
      %s109 = sphi 0, %s108
      %s123 = sphi 0, %s109
      %s133 = sphi 0, %s135
      %s136 = sphi 0, %s133
      %s137 = sphi 0, %s136
      %s153 = sphi 0, %s137
      %s161 = sphi 0, %s163
      %s164 = sphi 0, %s161
      %s165 = sphi 0, %s164
      %s181 = sphi 0, %s165
    $region4: #{tpu_custom_call.1} parent=1 // loop_header_branch
      %26 = sbr.rel (%p24) target = $region8
    $region5: #{tpu_custom_call.1} parent=1 // loop_body
      %s28 = ssub.s32 %s23, 1
      %s29 = ssub.s32 %s23, 2
      %s39 = sadd.s32 1, %s32
      %p40 = scmp.ge.s32.totalorder %s39, 1
      %s41 = scalar_select %p40, 0, %s39
      %s42 = sadd.s32 1, %s31
      %s43 = scalar_select %p40, %s42, %s31
      %p44 = scmp.ge.s32.totalorder %s43, 1
      %s45 = scalar_select %p44, 0, %s43
      %s46 = sadd.s32 1, %s30
      %s47 = scalar_select %p44, %s46, %s30
      %p48 = scmp.ge.s32.totalorder %s47, 2
      %s49 = scalar_select %p48, 0, %s47
      %s50 = sadd.s32 %s30, %s32
      %s51 = sadd.s32 %s49, %s41
      %s52 = ssub.s32 %s31, %s45
      %s53 = ssub.s32 %s50, %s51
      %s54 = sor.u32 %s52, %s53
      %p55 = scmp.eq.s32.totalorder %s54, 0
      %s57 = sadd.s32 %s56, 1
      %s58 = scalar_select %p55, %s56, %s57
      %p61 = pneg %p55
      %p62 = scmp.eq.s32.totalorder %s23, 1
      %p63 = por %p61, %p62
      %p64 = scmp.ne.s32.totalorder %s56, %s59
      %p65 = scmp.eq.s32.totalorder %s23, 0
      %p66 = por %p64, %p65
      %p67 = scmp.ne.s32.totalorder %s56, %s59
      %p68 = scmp.eq.s32.totalorder %s28, 1
      %p69 = por %p67, %p68
      %p70 = scmp.ne.s32.totalorder %s59, %s60
      %p71 = scmp.eq.s32.totalorder %s28, 0
      %p72 = por %p70, %p71
      %p73 = scmp.ne.s32.totalorder %s59, %s60
      %p74 = scmp.eq.s32.totalorder %s29, 1
      %p75 = por %p73, %p74
      %p77 = scmp.ne.s32.totalorder %s60, %s76
      %p78 = scmp.eq.s32.totalorder %s29, 0
      %p79 = por %p77, %p78
      %s80 = ssub.s32 %s30, %s49
      %p81 = scmp.eq.s32.totalorder %s80, 0
      %s83 = sadd.s32 %s82, 1
      %s84 = scalar_select %p81, %s82, %s83
      %p87 = pneg %p81
      %p88 = scmp.eq.s32.totalorder %s23, 1
      %p89 = por %p87, %p88
      %p90 = scmp.ne.s32.totalorder %s82, %s85
      %p91 = scmp.eq.s32.totalorder %s23, 0
      %p92 = por %p90, %p91
      %p93 = scmp.ne.s32.totalorder %s82, %s85
      %p94 = scmp.eq.s32.totalorder %s28, 1
      %p95 = por %p93, %p94
      %p96 = scmp.ne.s32.totalorder %s85, %s86
      %p97 = scmp.eq.s32.totalorder %s28, 0
      %p98 = por %p96, %p97
      %p99 = scmp.ne.s32.totalorder %s85, %s86
      %p100 = scmp.eq.s32.totalorder %s29, 1
      %p101 = por %p99, %p100
      %p103 = scmp.ne.s32.totalorder %s86, %s102
      %p104 = scmp.eq.s32.totalorder %s29, 0
      %p105 = por %p103, %p104
      %s107 = sadd.s32 %s106, 1
      %p110 = scmp.eq.s32.totalorder %s23, 1
      %p111 = scmp.ne.s32.totalorder %s106, %s108
      %p112 = scmp.eq.s32.totalorder %s23, 0
      %p113 = por %p111, %p112
      %p114 = scmp.ne.s32.totalorder %s106, %s108
      %p115 = scmp.eq.s32.totalorder %s28, 1
      %p116 = por %p114, %p115
      %p117 = scmp.ne.s32.totalorder %s108, %s109
      %p118 = scmp.eq.s32.totalorder %s28, 0
      %p119 = por %p117, %p118
      %p120 = scmp.ne.s32.totalorder %s108, %s109
      %p121 = scmp.eq.s32.totalorder %s29, 1
      %p122 = por %p120, %p121
      %p124 = scmp.ne.s32.totalorder %s109, %s123
      %p125 = scmp.eq.s32.totalorder %s29, 0
      %p126 = por %p124, %p125
      %s127 = sadd.s32 %s30, %s32
      %s128 = sadd.s32 %s49, %s41
      %s129 = ssub.s32 %s31, %s45
      %s130 = ssub.s32 %s127, %s128
      %s131 = sor.u32 %s129, %s130
      %p132 = scmp.eq.s32.totalorder %s131, 0
      %s134 = sadd.s32 %s133, 1
      %s135 = scalar_select %p132, %s133, %s134
      %p138 = pneg %p132
      %p139 = scmp.eq.s32.totalorder %s23, 1
      %p140 = por %p138, %p139
      %p141 = scmp.ne.s32.totalorder %s133, %s136
      %p142 = scmp.eq.s32.totalorder %s23, 0
      %p143 = por %p141, %p142
      %p144 = scmp.ne.s32.totalorder %s133, %s136
      %p145 = scmp.eq.s32.totalorder %s28, 1
      %p146 = por %p144, %p145
      %p147 = scmp.ne.s32.totalorder %s136, %s137
      %p148 = scmp.eq.s32.totalorder %s28, 0
      %p149 = por %p147, %p148
      %p150 = scmp.ne.s32.totalorder %s136, %s137
      %p151 = scmp.eq.s32.totalorder %s29, 1
      %p152 = por %p150, %p151
      %p154 = scmp.ne.s32.totalorder %s137, %s153
      %p155 = scmp.eq.s32.totalorder %s29, 0
      %p156 = por %p154, %p155
      %s157 = ssub.s32 %s31, %s45
      %s158 = ssub.s32 %s30, %s49
      %s159 = sor.u32 %s157, %s158
      %p160 = scmp.eq.s32.totalorder %s159, 0
      %s162 = sadd.s32 %s161, 1
      %s163 = scalar_select %p160, %s161, %s162
      %p166 = pneg %p160
      %p167 = scmp.eq.s32.totalorder %s23, 1
      %p168 = por %p166, %p167
      %p169 = scmp.ne.s32.totalorder %s161, %s164
      %p170 = scmp.eq.s32.totalorder %s23, 0
      %p171 = por %p169, %p170
      %p172 = scmp.ne.s32.totalorder %s161, %s164
      %p173 = scmp.eq.s32.totalorder %s28, 1
      %p174 = por %p172, %p173
      %p175 = scmp.ne.s32.totalorder %s164, %s165
      %p176 = scmp.eq.s32.totalorder %s28, 0
      %p177 = por %p175, %p176
      %p178 = scmp.ne.s32.totalorder %s164, %s165
      %p179 = scmp.eq.s32.totalorder %s29, 1
      %p180 = por %p178, %p179
      %p182 = scmp.ne.s32.totalorder %s165, %s181
      %p183 = scmp.eq.s32.totalorder %s29, 0
      %p184 = por %p182, %p183
      %p185 = scmp.le.s32.totalorder 1, %s23
      %p186 = scmp.lt.s32.totalorder %s23, 3
      %p187 = pnand %p185, %p186
      %p188 = pneg %p187
      // Predicated region
      $region9: #{tpu_custom_call.1} parent=5 // pred_check
        _
      $region10: #{tpu_custom_call.1} parent=5 // pred_check_branch
        %190 = sbr.rel (%p187) target = $region12
      $region11: #{tpu_custom_call.1} parent=5 // pred_region
        %s191 = ssub.s32 %s23, 1
        // Predicated region
        $region13: #{tpu_custom_call.1} parent=11 // pred_check
          %p192 = pneg %p119
        $region14: #{tpu_custom_call.1} parent=11 // pred_check_branch
          %194 = sbr.rel (%p192) target = $region16
        $region15: #{tpu_custom_call.1} parent=11 // pred_region
          _
        $region16: #{tpu_custom_call.1} parent=11 // pred_fallthru
          _
      $region12: #{tpu_custom_call.1} parent=5 // pred_fallthru
        _
      %p195 = scmp.lt.s32.totalorder %s23, 2
      // Predicated region
      $region17: #{tpu_custom_call.1} parent=5 // pred_check
        %p196 = pneg %p195
      $region18: #{tpu_custom_call.1} parent=5 // pred_check_branch
        %198 = sbr.rel (%p196) target = $region20
      $region19: #{tpu_custom_call.1} parent=5 // pred_region
        // Predicated region
        $region21: #{tpu_custom_call.1} parent=19 // pred_check
          %p199 = pneg %p66
        $region22: #{tpu_custom_call.1} parent=19 // pred_check_branch
          %201 = sbr.rel (%p199) target = $region24
        $region23: #{tpu_custom_call.1} parent=19 // pred_region
          #allocation11 [shape = 'u32[6]{0}', space=smem, size = 0x18, scoped, tag = 'DMA stride descriptor']
          %s202 = sand.u32 %s56, 1
          %s203 = scalar_lea.sflag [#allocation3], %s202
          %s204 = sand.u32 %s56, 1
          %s205 = smul.addr %s204, 256
          %s206 = scalar_lea.vmem [#allocation2], %s205
          %s207 = sadd.s32 %s30, %s32
          %s208 = smul.u32 2, %s31
          %s209 = smul.u32 16, %s207
          %s211 = ssub.s32 4096, 4096
          %212 = vsyncadd %s203, %s211
          %s213 = smul.addr %s209, 2
          %s214 = smul.addr %s208, 64
          %s215 = sadd.s32 %s213, %s214
          %s216 = smul.addr %s215, 64
          %s217 = scalar_lea.hbm %s0, %s216
          %s219 = sshll.u32 1, 14
          %s220 = sxor.u32 4294967295, %s219
          %s222 = sld [smem:[#allocation0]]
          %s223 = sadd.s32 2, %s222
          %s225 = sshll.u32 7, 26
          %s226 = sxor.u32 4294967295, %s225
          %s227 = sand.u32 0, %s226
          %s228 = sshll.u32 %s223, 26
          %s229 = sor.u32 %s227, %s228
          %s230 = sshll.u32 %s206, 4
          %s231 = int_to_ptr.vmem [resolvable:$true] %s230
          %237 = sst [smem:[#allocation11]] 4096
          %s238 = scalar_lea.smem [#allocation11], 1
          %239 = sst [smem:[%s238]] 2048
          %s240 = scalar_lea.smem [#allocation11], 2
          %241 = sst [smem:[%s240]] 16
          %s242 = scalar_lea.smem [#allocation11], 3
          %243 = sst [smem:[%s242]] 128
          %s244 = scalar_lea.smem [#allocation11], 4
          %245 = sst [smem:[%s244]] 128
          %s246 = scalar_lea.smem [#allocation11], 5
          %247 = sst [smem:[%s246]] 8
          %249 = dma.general %s217, 4096, %s231, %s203, 131072, [#allocation11], %s229, 0
        $region24: #{tpu_custom_call.1} parent=19 // pred_fallthru
          _
        // Predicated region
        $region25: #{tpu_custom_call.1} parent=19 // pred_check
          %p250 = pneg %p92
        $region26: #{tpu_custom_call.1} parent=19 // pred_check_branch
          %252 = sbr.rel (%p250) target = $region28
        $region27: #{tpu_custom_call.1} parent=19 // pred_region
          %s253 = sand.u32 %s82, 1
          %s254 = scalar_lea.sflag [#allocation6], %s253
          %s255 = sand.u32 %s82, 1
          %s256 = smul.addr %s255, 128
          %s257 = scalar_lea.vmem [#allocation5], %s256
          %s258 = smul.u32 16, %s30
          %s260 = ssub.s32 2048, 2048
          %261 = vsyncadd %s254, %s260
          %s262 = smul.addr %s258, 128
          %s263 = scalar_lea.hbm %s1, %s262
          %s264 = sshll.u32 %s257, 4
          %s265 = int_to_ptr.vmem [resolvable:$true] %s264
          %270 = dma.hbm_to_vmem [thread:$0]  %s263, 2048, %s265, %s254, 128, 128, 8
        $region28: #{tpu_custom_call.1} parent=19 // pred_fallthru
          _
      $region20: #{tpu_custom_call.1} parent=5 // pred_fallthru
        _
      %p271 = scmp.le.s32.totalorder 1, %s23
      %p272 = scmp.lt.s32.totalorder %s23, 3
      %p273 = pnand %p271, %p272
      %p274 = pneg %p273
      // Predicated region
      $region29: #{tpu_custom_call.1} parent=5 // pred_check
        _
      $region30: #{tpu_custom_call.1} parent=5 // pred_check_branch
        %276 = sbr.rel (%p273) target = $region32
      $region31: #{tpu_custom_call.1} parent=5 // pred_region
        %s277 = ssub.s32 %s23, 1
        %s278 = sand.u32 %s59, 1
        %s279 = scalar_lea.sflag [#allocation3], %s278
        %s280 = sand.u32 %s59, 1
        %s281 = smul.addr %s280, 256
        %s282 = scalar_lea.vmem [#allocation2], %s281
        // Predicated region
        $region33: #{tpu_custom_call.1} parent=31 // pred_check
          %p283 = pneg %p72
        $region34: #{tpu_custom_call.1} parent=31 // pred_check_branch
          %285 = sbr.rel (%p283) target = $region36
        $region35: #{tpu_custom_call.1} parent=31 // pred_region
          %286 = dma.done %s279, 4096
        $region36: #{tpu_custom_call.1} parent=31 // pred_fallthru
          _
        %s287 = sand.u32 %s85, 1
        %s288 = scalar_lea.sflag [#allocation6], %s287
        %s289 = sand.u32 %s85, 1
        %s290 = smul.addr %s289, 128
        %s291 = scalar_lea.vmem [#allocation5], %s290
        // Predicated region
        $region37: #{tpu_custom_call.1} parent=31 // pred_check
          %p292 = pneg %p98
        $region38: #{tpu_custom_call.1} parent=31 // pred_check_branch
          %294 = sbr.rel (%p292) target = $region40
        $region39: #{tpu_custom_call.1} parent=31 // pred_region
          %295 = dma.done %s288, 2048
        $region40: #{tpu_custom_call.1} parent=31 // pred_fallthru
          _
        %s296 = sand.u32 %s59, 1
        %s297 = scalar_lea.sflag [#allocation3], %s296
        %s298 = sand.u32 %s59, 1
        %s299 = smul.addr %s298, 256
        %s300 = scalar_lea.vmem [#allocation2], %s299
        %p301 = pneg %p72
        %p302 = pneg %p69
        %s303 = sand.u32 %s85, 1
        %s304 = scalar_lea.sflag [#allocation6], %s303
        %s305 = sand.u32 %s85, 1
        %s306 = smul.addr %s305, 128
        %s307 = scalar_lea.vmem [#allocation5], %s306
        %p308 = pneg %p98
        %p309 = pneg %p95
        %p310 = pneg %p119
        %p311 = pneg %p116
        %p312 = pneg %p149
        %p313 = pneg %p146
        %s314 = sand.u32 %s136, 1
        %s315 = scalar_lea.sflag [#allocation4], %s314
        %s316 = sand.u32 %s136, 1
        %s317 = smul.addr %s316, 2
        %s318 = scalar_lea.vmem [#allocation7], %s317
        %p319 = pneg %p177
        %p320 = pneg %p174
        %s321 = sand.u32 %s164, 1
        %s322 = scalar_lea.sflag [#allocation9], %s321
        %s323 = sand.u32 %s164, 1
        %s324 = smul.addr %s323, 2
        %s325 = scalar_lea.vmem [#allocation8], %s324
        %s326 = sadd.s32 %s33, %s35
        %s327 = smul.u32 2, %s34
        %s328 = smul.u32 16, %s326
        %s329 = smul.u32 16, %s33
        %s330 = sadd.s32 %s33, %s35
        %p331 = scmp.eq.s32.totalorder %s35, 0
        // Predicated region
        $region41: #{tpu_custom_call.1} parent=31 // pred_check
          %p332 = pneg %p331
        $region42: #{tpu_custom_call.1} parent=31 // pred_check_branch
          %334 = sbr.rel (%p332) target = $region44
        $region43: #{tpu_custom_call.1} parent=31 // pred_region
          %v335 = vld [vmem:[%s2] sm:$0x1]
          %v337 = vlaneseq
          %v338 = vshrl.u32 %v337, 7
          %v339 = vsub.s32 0, %v338
          %v340 = vrot.slane %v335, %v339
          %p342 = scmp.eq.s32.totalorder %s33, 0
          %s343 = scalar_select %p342, 1, 0
          %s344 = scvt.s32.f32 %s343
          %v345 = vstv %s344
          %v346 = vmul.f32 %v340, %v345
          %347 = vst [vmem:[%s325] sm:$0x3] %v346
        $region44: #{tpu_custom_call.1} parent=31 // pred_fallthru
          _
        %v348 = vld [vmem:[%s282] sm:$0xf]
        %v349 = vld [vmem:[%s282 + $0x8] sm:$0xf]
        %v350 = vld [vmem:[%s282 + $0x10] sm:$0xf]
        %v351 = vld [vmem:[%s282 + $0x18] sm:$0xf]
        %v352 = vld [vmem:[%s282 + $0x20] sm:$0xf]
        %v353 = vld [vmem:[%s282 + $0x28] sm:$0xf]
        %v354 = vld [vmem:[%s282 + $0x30] sm:$0xf]
        %v355 = vld [vmem:[%s282 + $0x38] sm:$0xf]
        %v356 = vld [vmem:[%s282 + $0x40] sm:$0xf]
        %v357 = vld [vmem:[%s282 + $0x48] sm:$0xf]
        %v358 = vld [vmem:[%s282 + $0x50] sm:$0xf]
        %v359 = vld [vmem:[%s282 + $0x58] sm:$0xf]
        %v360 = vld [vmem:[%s282 + $0x60] sm:$0xf]
        %v361 = vld [vmem:[%s282 + $0x68] sm:$0xf]
        %v362 = vld [vmem:[%s282 + $0x70] sm:$0xf]
        %v363 = vld [vmem:[%s282 + $0x78] sm:$0xf]
        %v364 = vld [vmem:[%s282 + $0x80] sm:$0xf]
        %v365 = vld [vmem:[%s282 + $0x88] sm:$0xf]
        %v366 = vld [vmem:[%s282 + $0x90] sm:$0xf]
        %v367 = vld [vmem:[%s282 + $0x98] sm:$0xf]
        %v368 = vld [vmem:[%s282 + $0xa0] sm:$0xf]
        %v369 = vld [vmem:[%s282 + $0xa8] sm:$0xf]
        %v370 = vld [vmem:[%s282 + $0xb0] sm:$0xf]
        %v371 = vld [vmem:[%s282 + $0xb8] sm:$0xf]
        %v372 = vld [vmem:[%s282 + $0xc0] sm:$0xf]
        %v373 = vld [vmem:[%s282 + $0xc8] sm:$0xf]
        %v374 = vld [vmem:[%s282 + $0xd0] sm:$0xf]
        %v375 = vld [vmem:[%s282 + $0xd8] sm:$0xf]
        %v376 = vld [vmem:[%s282 + $0xe0] sm:$0xf]
        %v377 = vld [vmem:[%s282 + $0xe8] sm:$0xf]
        %v378 = vld [vmem:[%s282 + $0xf0] sm:$0xf]
        %v379 = vld [vmem:[%s282 + $0xf8] sm:$0xf]
        %v380 = vunpack.c.l.bf16 %v348
        %v381 = vunpack.c.l.bf16 %v349
        %v382 = vunpack.c.l.bf16 %v350
        %v383 = vunpack.c.l.bf16 %v351
        %v384 = vunpack.c.l.bf16 %v352
        %v385 = vunpack.c.l.bf16 %v353
        %v386 = vunpack.c.l.bf16 %v354
        %v387 = vunpack.c.l.bf16 %v355
        %v388 = vunpack.c.l.bf16 %v356
        %v389 = vunpack.c.l.bf16 %v357
        %v390 = vunpack.c.l.bf16 %v358
        %v391 = vunpack.c.l.bf16 %v359
        %v392 = vunpack.c.l.bf16 %v360
        %v393 = vunpack.c.l.bf16 %v361
        %v394 = vunpack.c.l.bf16 %v362
        %v395 = vunpack.c.l.bf16 %v363
        %v396 = vunpack.c.l.bf16 %v364
        %v397 = vunpack.c.l.bf16 %v365
        %v398 = vunpack.c.l.bf16 %v366
        %v399 = vunpack.c.l.bf16 %v367
        %v400 = vunpack.c.l.bf16 %v368
        %v401 = vunpack.c.l.bf16 %v369
        %v402 = vunpack.c.l.bf16 %v370
        %v403 = vunpack.c.l.bf16 %v371
        %v404 = vunpack.c.l.bf16 %v372
        %v405 = vunpack.c.l.bf16 %v373
        %v406 = vunpack.c.l.bf16 %v374
        %v407 = vunpack.c.l.bf16 %v375
        %v408 = vunpack.c.l.bf16 %v376
        %v409 = vunpack.c.l.bf16 %v377
        %v410 = vunpack.c.l.bf16 %v378
        %v411 = vunpack.c.l.bf16 %v379
        %v412 = vld [vmem:[%s282 + $0x4] sm:$0xf]
        %v413 = vld [vmem:[%s282 + $0xc] sm:$0xf]
        %v414 = vld [vmem:[%s282 + $0x14] sm:$0xf]
        %v415 = vld [vmem:[%s282 + $0x1c] sm:$0xf]
        %v416 = vld [vmem:[%s282 + $0x24] sm:$0xf]
        %v417 = vld [vmem:[%s282 + $0x2c] sm:$0xf]
        %v418 = vld [vmem:[%s282 + $0x34] sm:$0xf]
        %v419 = vld [vmem:[%s282 + $0x3c] sm:$0xf]
        %v420 = vld [vmem:[%s282 + $0x44] sm:$0xf]
        %v421 = vld [vmem:[%s282 + $0x4c] sm:$0xf]
        %v422 = vld [vmem:[%s282 + $0x54] sm:$0xf]
        %v423 = vld [vmem:[%s282 + $0x5c] sm:$0xf]
        %v424 = vld [vmem:[%s282 + $0x64] sm:$0xf]
        %v425 = vld [vmem:[%s282 + $0x6c] sm:$0xf]
        %v426 = vld [vmem:[%s282 + $0x74] sm:$0xf]
        %v427 = vld [vmem:[%s282 + $0x7c] sm:$0xf]
        %v428 = vld [vmem:[%s282 + $0x84] sm:$0xf]
        %v429 = vld [vmem:[%s282 + $0x8c] sm:$0xf]
        %v430 = vld [vmem:[%s282 + $0x94] sm:$0xf]
        %v431 = vld [vmem:[%s282 + $0x9c] sm:$0xf]
        %v432 = vld [vmem:[%s282 + $0xa4] sm:$0xf]
        %v433 = vld [vmem:[%s282 + $0xac] sm:$0xf]
        %v434 = vld [vmem:[%s282 + $0xb4] sm:$0xf]
        %v435 = vld [vmem:[%s282 + $0xbc] sm:$0xf]
        %v436 = vld [vmem:[%s282 + $0xc4] sm:$0xf]
        %v437 = vld [vmem:[%s282 + $0xcc] sm:$0xf]
        %v438 = vld [vmem:[%s282 + $0xd4] sm:$0xf]
        %v439 = vld [vmem:[%s282 + $0xdc] sm:$0xf]
        %v440 = vld [vmem:[%s282 + $0xe4] sm:$0xf]
        %v441 = vld [vmem:[%s282 + $0xec] sm:$0xf]
        %v442 = vld [vmem:[%s282 + $0xf4] sm:$0xf]
        %v443 = vld [vmem:[%s282 + $0xfc] sm:$0xf]
        %v444 = vunpack.c.l.bf16 %v412
        %v445 = vunpack.c.l.bf16 %v413
        %v446 = vunpack.c.l.bf16 %v414
        %v447 = vunpack.c.l.bf16 %v415
        %v448 = vunpack.c.l.bf16 %v416
        %v449 = vunpack.c.l.bf16 %v417
        %v450 = vunpack.c.l.bf16 %v418
        %v451 = vunpack.c.l.bf16 %v419
        %v452 = vunpack.c.l.bf16 %v420
        %v453 = vunpack.c.l.bf16 %v421
        %v454 = vunpack.c.l.bf16 %v422
        %v455 = vunpack.c.l.bf16 %v423
        %v456 = vunpack.c.l.bf16 %v424
        %v457 = vunpack.c.l.bf16 %v425
        %v458 = vunpack.c.l.bf16 %v426
        %v459 = vunpack.c.l.bf16 %v427
        %v460 = vunpack.c.l.bf16 %v428
        %v461 = vunpack.c.l.bf16 %v429
        %v462 = vunpack.c.l.bf16 %v430
        %v463 = vunpack.c.l.bf16 %v431
        %v464 = vunpack.c.l.bf16 %v432
        %v465 = vunpack.c.l.bf16 %v433
        %v466 = vunpack.c.l.bf16 %v434
        %v467 = vunpack.c.l.bf16 %v435
        %v468 = vunpack.c.l.bf16 %v436
        %v469 = vunpack.c.l.bf16 %v437
        %v470 = vunpack.c.l.bf16 %v438
        %v471 = vunpack.c.l.bf16 %v439
        %v472 = vunpack.c.l.bf16 %v440
        %v473 = vunpack.c.l.bf16 %v441
        %v474 = vunpack.c.l.bf16 %v442
        %v475 = vunpack.c.l.bf16 %v443
        %v476 = vadd.f32 %v380, %v444
        %v477 = vadd.f32 %v381, %v445
        %v478 = vadd.f32 %v382, %v446
        %v479 = vadd.f32 %v383, %v447
        %v480 = vadd.f32 %v384, %v448
        %v481 = vadd.f32 %v385, %v449
        %v482 = vadd.f32 %v386, %v450
        %v483 = vadd.f32 %v387, %v451
        %v484 = vadd.f32 %v388, %v452
        %v485 = vadd.f32 %v389, %v453
        %v486 = vadd.f32 %v390, %v454
        %v487 = vadd.f32 %v391, %v455
        %v488 = vadd.f32 %v392, %v456
        %v489 = vadd.f32 %v393, %v457
        %v490 = vadd.f32 %v394, %v458
        %v491 = vadd.f32 %v395, %v459
        %v492 = vadd.f32 %v396, %v460
        %v493 = vadd.f32 %v397, %v461
        %v494 = vadd.f32 %v398, %v462
        %v495 = vadd.f32 %v399, %v463
        %v496 = vadd.f32 %v400, %v464
        %v497 = vadd.f32 %v401, %v465
        %v498 = vadd.f32 %v402, %v466
        %v499 = vadd.f32 %v403, %v467
        %v500 = vadd.f32 %v404, %v468
        %v501 = vadd.f32 %v405, %v469
        %v502 = vadd.f32 %v406, %v470
        %v503 = vadd.f32 %v407, %v471
        %v504 = vadd.f32 %v408, %v472
        %v505 = vadd.f32 %v409, %v473
        %v506 = vadd.f32 %v410, %v474
        %v507 = vadd.f32 %v411, %v475
        %508 = vadd.xlane.f32.xlu0 %v476
        %v509 = vpop.xlane.xlu0 %508
        %510 = vadd.xlane.f32.xlu0 %v477
        %v511 = vpop.xlane.xlu0 %510
        %512 = vadd.xlane.f32.xlu0 %v478
        %v513 = vpop.xlane.xlu0 %512
        %514 = vadd.xlane.f32.xlu0 %v479
        %v515 = vpop.xlane.xlu0 %514
        %516 = vadd.xlane.f32.xlu0 %v480
        %v517 = vpop.xlane.xlu0 %516
        %518 = vadd.xlane.f32.xlu0 %v481
        %v519 = vpop.xlane.xlu0 %518
        %520 = vadd.xlane.f32.xlu0 %v482
        %v521 = vpop.xlane.xlu0 %520
        %522 = vadd.xlane.f32.xlu0 %v483
        %v523 = vpop.xlane.xlu0 %522
        %524 = vadd.xlane.f32.xlu0 %v484
        %v525 = vpop.xlane.xlu0 %524
        %526 = vadd.xlane.f32.xlu0 %v485
        %v527 = vpop.xlane.xlu0 %526
        %528 = vadd.xlane.f32.xlu0 %v486
        %v529 = vpop.xlane.xlu0 %528
        %530 = vadd.xlane.f32.xlu0 %v487
        %v531 = vpop.xlane.xlu0 %530
        %532 = vadd.xlane.f32.xlu0 %v488
        %v533 = vpop.xlane.xlu0 %532
        %534 = vadd.xlane.f32.xlu0 %v489
        %v535 = vpop.xlane.xlu0 %534
        %536 = vadd.xlane.f32.xlu0 %v490
        %v537 = vpop.xlane.xlu0 %536
        %538 = vadd.xlane.f32.xlu0 %v491
        %v539 = vpop.xlane.xlu0 %538
        %540 = vadd.xlane.f32.xlu0 %v492
        %v541 = vpop.xlane.xlu0 %540
        %542 = vadd.xlane.f32.xlu0 %v493
        %v543 = vpop.xlane.xlu0 %542
        %544 = vadd.xlane.f32.xlu0 %v494
        %v545 = vpop.xlane.xlu0 %544
        %546 = vadd.xlane.f32.xlu0 %v495
        %v547 = vpop.xlane.xlu0 %546
        %548 = vadd.xlane.f32.xlu0 %v496
        %v549 = vpop.xlane.xlu0 %548
        %550 = vadd.xlane.f32.xlu0 %v497
        %v551 = vpop.xlane.xlu0 %550
        %552 = vadd.xlane.f32.xlu0 %v498
        %v553 = vpop.xlane.xlu0 %552
        %554 = vadd.xlane.f32.xlu0 %v499
        %v555 = vpop.xlane.xlu0 %554
        %556 = vadd.xlane.f32.xlu0 %v500
        %v557 = vpop.xlane.xlu0 %556
        %558 = vadd.xlane.f32.xlu0 %v501
        %v559 = vpop.xlane.xlu0 %558
        %560 = vadd.xlane.f32.xlu0 %v502
        %v561 = vpop.xlane.xlu0 %560
        %562 = vadd.xlane.f32.xlu0 %v503
        %v563 = vpop.xlane.xlu0 %562
        %564 = vadd.xlane.f32.xlu0 %v504
        %v565 = vpop.xlane.xlu0 %564
        %566 = vadd.xlane.f32.xlu0 %v505
        %v567 = vpop.xlane.xlu0 %566
        %568 = vadd.xlane.f32.xlu0 %v506
        %v569 = vpop.xlane.xlu0 %568
        %570 = vadd.xlane.f32.xlu0 %v507
        %v571 = vpop.xlane.xlu0 %570
        %v572 = vmul.f32 %v509, 0.00390625
        %v573 = vmul.f32 %v511, 0.00390625
        %v574 = vmul.f32 %v513, 0.00390625
        %v575 = vmul.f32 %v515, 0.00390625
        %v576 = vmul.f32 %v517, 0.00390625
        %v577 = vmul.f32 %v519, 0.00390625
        %v578 = vmul.f32 %v521, 0.00390625
        %v579 = vmul.f32 %v523, 0.00390625
        %v580 = vmul.f32 %v525, 0.00390625
        %v581 = vmul.f32 %v527, 0.00390625
        %v582 = vmul.f32 %v529, 0.00390625
        %v583 = vmul.f32 %v531, 0.00390625
        %v584 = vmul.f32 %v533, 0.00390625
        %v585 = vmul.f32 %v535, 0.00390625
        %v586 = vmul.f32 %v537, 0.00390625
        %v587 = vmul.f32 %v539, 0.00390625
        %v588 = vmul.f32 %v541, 0.00390625
        %v589 = vmul.f32 %v543, 0.00390625
        %v590 = vmul.f32 %v545, 0.00390625
        %v591 = vmul.f32 %v547, 0.00390625
        %v592 = vmul.f32 %v549, 0.00390625
        %v593 = vmul.f32 %v551, 0.00390625
        %v594 = vmul.f32 %v553, 0.00390625
        %v595 = vmul.f32 %v555, 0.00390625
        %v596 = vmul.f32 %v557, 0.00390625
        %v597 = vmul.f32 %v559, 0.00390625
        %v598 = vmul.f32 %v561, 0.00390625
        %v599 = vmul.f32 %v563, 0.00390625
        %v600 = vmul.f32 %v565, 0.00390625
        %v601 = vmul.f32 %v567, 0.00390625
        %v602 = vmul.f32 %v569, 0.00390625
        %v603 = vmul.f32 %v571, 0.00390625
        %v636 = vlaneseq
        %v637 = vand.u32 %v636, 127
        %v638 = vlaneseq
        %v639 = vshrl.u32 %v638, 7
        %v640 = vsub.s32 %v637, %v639
        %v641 = vrot.slane %v572, %v640
        %v642 = vadd.s32 %v637, 4294967288
        %v643 = vlaneseq
        %v644 = vshrl.u32 %v643, 7
        %v645 = vsub.s32 %v642, %v644
        %v646 = vrot.slane %v573, %v645
        %vm647 = vcmask 130112
        %v648 = vsel %vm647, %v646, %v641
        %v649 = vadd.s32 %v637, 4294967280
        %v650 = vlaneseq
        %v651 = vshrl.u32 %v650, 7
        %v652 = vsub.s32 %v649, %v651
        %v653 = vrot.slane %v574, %v652
        %vm654 = vcmask 195712
        %v655 = vsel %vm654, %v653, %v648
        %v656 = vadd.s32 %v637, 4294967272
        %v657 = vlaneseq
        %v658 = vshrl.u32 %v657, 7
        %v659 = vsub.s32 %v656, %v658
        %v660 = vrot.slane %v575, %v659
        %vm661 = vcmask 261312
        %v662 = vsel %vm661, %v660, %v655
        %v663 = vadd.s32 %v637, 4294967264
        %v664 = vlaneseq
        %v665 = vshrl.u32 %v664, 7
        %v666 = vsub.s32 %v663, %v665
        %v667 = vrot.slane %v576, %v666
        %vm668 = vcmask 326912
        %v669 = vsel %vm668, %v667, %v662
        %v670 = vadd.s32 %v637, 4294967256
        %v671 = vlaneseq
        %v672 = vshrl.u32 %v671, 7
        %v673 = vsub.s32 %v670, %v672
        %v674 = vrot.slane %v577, %v673
        %vm675 = vcmask 392512
        %v676 = vsel %vm675, %v674, %v669
        %v677 = vadd.s32 %v637, 4294967248
        %v678 = vlaneseq
        %v679 = vshrl.u32 %v678, 7
        %v680 = vsub.s32 %v677, %v679
        %v681 = vrot.slane %v578, %v680
        %vm682 = vcmask 458112
        %v683 = vsel %vm682, %v681, %v676
        %v684 = vadd.s32 %v637, 4294967240
        %v685 = vlaneseq
        %v686 = vshrl.u32 %v685, 7
        %v687 = vsub.s32 %v684, %v686
        %v688 = vrot.slane %v579, %v687
        %vm689 = vcmask 523712
        %v690 = vsel %vm689, %v688, %v683
        %v691 = vadd.s32 %v637, 4294967232
        %v692 = vlaneseq
        %v693 = vshrl.u32 %v692, 7
        %v694 = vsub.s32 %v691, %v693
        %v695 = vrot.slane %v580, %v694
        %vm696 = vcmask 589312
        %v697 = vsel %vm696, %v695, %v690
        %v698 = vadd.s32 %v637, 4294967224
        %v699 = vlaneseq
        %v700 = vshrl.u32 %v699, 7
        %v701 = vsub.s32 %v698, %v700
        %v702 = vrot.slane %v581, %v701
        %vm703 = vcmask 654912
        %v704 = vsel %vm703, %v702, %v697
        %v705 = vadd.s32 %v637, 4294967216
        %v706 = vlaneseq
        %v707 = vshrl.u32 %v706, 7
        %v708 = vsub.s32 %v705, %v707
        %v709 = vrot.slane %v582, %v708
        %vm710 = vcmask 720512
        %v711 = vsel %vm710, %v709, %v704
        %v712 = vadd.s32 %v637, 4294967208
        %v713 = vlaneseq
        %v714 = vshrl.u32 %v713, 7
        %v715 = vsub.s32 %v712, %v714
        %v716 = vrot.slane %v583, %v715
        %vm717 = vcmask 786112
        %v718 = vsel %vm717, %v716, %v711
        %v719 = vadd.s32 %v637, 4294967200
        %v720 = vlaneseq
        %v721 = vshrl.u32 %v720, 7
        %v722 = vsub.s32 %v719, %v721
        %v723 = vrot.slane %v584, %v722
        %vm724 = vcmask 851712
        %v725 = vsel %vm724, %v723, %v718
        %v726 = vadd.s32 %v637, 4294967192
        %v727 = vlaneseq
        %v728 = vshrl.u32 %v727, 7
        %v729 = vsub.s32 %v726, %v728
        %v730 = vrot.slane %v585, %v729
        %vm731 = vcmask 917312
        %v732 = vsel %vm731, %v730, %v725
        %v733 = vadd.s32 %v637, 4294967184
        %v734 = vlaneseq
        %v735 = vshrl.u32 %v734, 7
        %v736 = vsub.s32 %v733, %v735
        %v737 = vrot.slane %v586, %v736
        %vm738 = vcmask 982912
        %v739 = vsel %vm738, %v737, %v732
        %v740 = vadd.s32 %v637, 4294967176
        %v741 = vlaneseq
        %v742 = vshrl.u32 %v741, 7
        %v743 = vsub.s32 %v740, %v742
        %v744 = vrot.slane %v587, %v743
        %vm745 = vcmask 1048512
        %v746 = vsel %vm745, %v744, %v739
        %v747 = vlaneseq
        %v748 = vshrl.u32 %v747, 7
        %v749 = vsub.s32 %v637, %v748
        %v750 = vrot.slane %v588, %v749
        %v751 = vlaneseq
        %v752 = vshrl.u32 %v751, 7
        %v753 = vsub.s32 %v642, %v752
        %v754 = vrot.slane %v589, %v753
        %v755 = vsel %vm647, %v754, %v750
        %v756 = vlaneseq
        %v757 = vshrl.u32 %v756, 7
        %v758 = vsub.s32 %v649, %v757
        %v759 = vrot.slane %v590, %v758
        %v760 = vsel %vm654, %v759, %v755
        %v761 = vlaneseq
        %v762 = vshrl.u32 %v761, 7
        %v763 = vsub.s32 %v656, %v762
        %v764 = vrot.slane %v591, %v763
        %v765 = vsel %vm661, %v764, %v760
        %v766 = vlaneseq
        %v767 = vshrl.u32 %v766, 7
        %v768 = vsub.s32 %v663, %v767
        %v769 = vrot.slane %v592, %v768
        %v770 = vsel %vm668, %v769, %v765
        %v771 = vlaneseq
        %v772 = vshrl.u32 %v771, 7
        %v773 = vsub.s32 %v670, %v772
        %v774 = vrot.slane %v593, %v773
        %v775 = vsel %vm675, %v774, %v770
        %v776 = vlaneseq
        %v777 = vshrl.u32 %v776, 7
        %v778 = vsub.s32 %v677, %v777
        %v779 = vrot.slane %v594, %v778
        %v780 = vsel %vm682, %v779, %v775
        %v781 = vlaneseq
        %v782 = vshrl.u32 %v781, 7
        %v783 = vsub.s32 %v684, %v782
        %v784 = vrot.slane %v595, %v783
        %v785 = vsel %vm689, %v784, %v780
        %v786 = vlaneseq
        %v787 = vshrl.u32 %v786, 7
        %v788 = vsub.s32 %v691, %v787
        %v789 = vrot.slane %v596, %v788
        %v790 = vsel %vm696, %v789, %v785
        %v791 = vlaneseq
        %v792 = vshrl.u32 %v791, 7
        %v793 = vsub.s32 %v698, %v792
        %v794 = vrot.slane %v597, %v793
        %v795 = vsel %vm703, %v794, %v790
        %v796 = vlaneseq
        %v797 = vshrl.u32 %v796, 7
        %v798 = vsub.s32 %v705, %v797
        %v799 = vrot.slane %v598, %v798
        %v800 = vsel %vm710, %v799, %v795
        %v801 = vlaneseq
        %v802 = vshrl.u32 %v801, 7
        %v803 = vsub.s32 %v712, %v802
        %v804 = vrot.slane %v599, %v803
        %v805 = vsel %vm717, %v804, %v800
        %v806 = vlaneseq
        %v807 = vshrl.u32 %v806, 7
        %v808 = vsub.s32 %v719, %v807
        %v809 = vrot.slane %v600, %v808
        %v810 = vsel %vm724, %v809, %v805
        %v811 = vlaneseq
        %v812 = vshrl.u32 %v811, 7
        %v813 = vsub.s32 %v726, %v812
        %v814 = vrot.slane %v601, %v813
        %v815 = vsel %vm731, %v814, %v810
        %v816 = vlaneseq
        %v817 = vshrl.u32 %v816, 7
        %v818 = vsub.s32 %v733, %v817
        %v819 = vrot.slane %v602, %v818
        %v820 = vsel %vm738, %v819, %v815
        %v821 = vlaneseq
        %v822 = vshrl.u32 %v821, 7
        %v823 = vsub.s32 %v740, %v822
        %v824 = vrot.slane %v603, %v823
        %v825 = vsel %vm745, %v824, %v820
        %vm826 = vcmask 1041409
        %v827 = vsel %vm826, %v825, %v746
        %829 = vst [vmem:[%s318] sm:$0x3] %v827
        %v830 = vld [vmem:[%s291] sm:$0xff]
        %v831 = vld [vmem:[%s291 + $0x8] sm:$0xff]
        %v832 = vld [vmem:[%s291 + $0x10] sm:$0xff]
        %v833 = vld [vmem:[%s291 + $0x18] sm:$0xff]
        %v834 = vld [vmem:[%s291 + $0x20] sm:$0xff]
        %v835 = vld [vmem:[%s291 + $0x28] sm:$0xff]
        %v836 = vld [vmem:[%s291 + $0x30] sm:$0xff]
        %v837 = vld [vmem:[%s291 + $0x38] sm:$0xff]
        %v838 = vld [vmem:[%s291 + $0x40] sm:$0xff]
        %v839 = vld [vmem:[%s291 + $0x48] sm:$0xff]
        %v840 = vld [vmem:[%s291 + $0x50] sm:$0xff]
        %v841 = vld [vmem:[%s291 + $0x58] sm:$0xff]
        %v842 = vld [vmem:[%s291 + $0x60] sm:$0xff]
        %v843 = vld [vmem:[%s291 + $0x68] sm:$0xff]
        %v844 = vld [vmem:[%s291 + $0x70] sm:$0xff]
        %v845 = vld [vmem:[%s291 + $0x78] sm:$0xff]
        %v846 = vld [vmem:[%s325] sm:$0x3]
        %847 = vmatprep.subr.mxu0 0.0
        %848 = vmatpush1.msra.mxu0 %v845
        %849 = vmatprep.subr.mxu0 0.0
        %850 = vmatpush1.msra.mxu0 %v844
        %851 = vmatprep.subr.mxu0 0.0
        %852 = vmatpush1.msra.mxu0 %v843
        %853 = vmatprep.subr.mxu0 0.0
        %854 = vmatpush1.msra.mxu0 %v842
        %855 = vmatprep.subr.mxu0 0.0
        %856 = vmatpush1.msra.mxu0 %v841
        %857 = vmatprep.subr.mxu0 0.0
        %858 = vmatpush1.msra.mxu0 %v840
        %859 = vmatprep.subr.mxu0 0.0
        %860 = vmatpush1.msra.mxu0 %v839
        %861 = vmatprep.subr.mxu0 0.0
        %862 = vmatpush1.msra.mxu0 %v838
        %863 = vmatprep.subr.mxu0 0.0
        %864 = vmatpush1.msra.mxu0 %v837
        %865 = vmatprep.subr.mxu0 0.0
        %866 = vmatpush1.msra.mxu0 %v836
        %867 = vmatprep.subr.mxu0 0.0
        %868 = vmatpush1.msra.mxu0 %v835
        %869 = vmatprep.subr.mxu0 0.0
        %870 = vmatpush1.msra.mxu0 %v834
        %871 = vmatprep.subr.mxu0 0.0
        %872 = vmatpush1.msra.mxu0 %v833
        %873 = vmatprep.subr.mxu0 0.0
        %874 = vmatpush1.msra.mxu0 %v832
        %875 = vmatprep.subr.mxu0 0.0
        %876 = vmatpush1.msra.mxu0 %v831
        %877 = vmatprep.subr.mxu0 0.0
        %878 = vmatpush1.msra.mxu0 %v830
        %879 = vmatprep.subr.mxu0 0.0
        %880 = vmatpush2.msra.mxu0 0.0
        %881 = vmatprep.subr.mxu0 0.0
        %882 = vmatpush2.msra.mxu0 0.0
        %883 = vmatprep.subr.mxu0 0.0
        %884 = vmatpush2.msra.mxu0 0.0
        %885 = vmatprep.subr.mxu0 0.0
        %886 = vmatpush2.msra.mxu0 0.0
        %887 = vmatprep.subr.mxu0 0.0
        %888 = vmatpush2.msra.mxu0 0.0
        %889 = vmatprep.subr.mxu0 0.0
        %890 = vmatpush2.msra.mxu0 0.0
        %891 = vmatprep.subr.mxu0 0.0
        %892 = vmatpush2.msra.mxu0 0.0
        %893 = vmatprep.subr.mxu0 0.0
        %894 = vmatpush2.msra.mxu0 0.0
        %895 = vmatprep.subr.mxu0 0.0
        %896 = vmatpush2.msra.mxu0 0.0
        %897 = vmatprep.subr.mxu0 0.0
        %898 = vmatpush2.msra.mxu0 0.0
        %899 = vmatprep.subr.mxu0 0.0
        %900 = vmatpush2.msra.mxu0 0.0
        %901 = vmatprep.subr.mxu0 0.0
        %902 = vmatpush2.msra.mxu0 0.0
        %903 = vmatprep.subr.mxu0 0.0
        %904 = vmatpush2.msra.mxu0 0.0
        %905 = vmatprep.subr.mxu0 0.0
        %906 = vmatpush2.msra.mxu0 0.0
        %907 = vmatprep.subr.mxu0 0.0
        %908 = vmatpush2.msra.mxu0 0.0
        %909 = vmatprep.subr.mxu0 0.0
        %910 = vmatpush2.msra.mxu0 0.0
        %911 = vmatprep.mubr.f32.mxu0 0.0
        %912 = vmatmul.mubr.f32.gmra.mxu0 %v827
        %v913 = vpop.f32.mrf.mxu0
        %v914 = vadd.f32 0.0, %v913
        %v915 = vpop.f32.mrf.mxu0
        %916 = vdwg.mxu0
        %v917 = vadd.f32 %v846, %v914
        %918 = vst [vmem:[%s325] sm:$0x3] %v917
        %s919 = sand.u32 %s136, 1
        %s920 = scalar_lea.sflag [#allocation4], %s919
        %s921 = sand.u32 %s136, 1
        %s922 = smul.addr %s921, 2
        %s923 = scalar_lea.vmem [#allocation7], %s922
        %s924 = sand.u32 %s164, 1
        %s925 = scalar_lea.sflag [#allocation9], %s924
        %s926 = sand.u32 %s164, 1
        %s927 = smul.addr %s926, 2
        %s928 = scalar_lea.vmem [#allocation8], %s927
        // Predicated region
        $region45: #{tpu_custom_call.1} parent=31 // pred_check
          %p929 = pneg %p146
        $region46: #{tpu_custom_call.1} parent=31 // pred_check_branch
          %931 = sbr.rel (%p929) target = $region48
        $region47: #{tpu_custom_call.1} parent=31 // pred_region
          %s932 = sadd.s32 %s33, %s35
          %s934 = ssub.s32 32, 32
          %935 = vsyncadd %s920, %s934
          %s936 = smul.addr %s34, 2
          %s937 = sadd.s32 %s932, %s936
          %s938 = smul.addr %s937, 32
          %s939 = scalar_lea.hbm %s3, %s938
          %s941 = sshll.u32 %s923, 4
          %s942 = int_to_ptr.vmem [resolvable:$true] %s941
          %944 = dma.vmem_to_hbm [thread:$0]  %s942, 32, %s939, %s920
        $region48: #{tpu_custom_call.1} parent=31 // pred_fallthru
          _
        // Predicated region
        $region49: #{tpu_custom_call.1} parent=31 // pred_check
          %p945 = pneg %p174
        $region50: #{tpu_custom_call.1} parent=31 // pred_check_branch
          %947 = sbr.rel (%p945) target = $region52
        $region51: #{tpu_custom_call.1} parent=31 // pred_region
          %s949 = ssub.s32 32, 32
          %950 = vsyncadd %s925, %s949
          %s951 = smul.addr %s34, 2
          %s952 = sadd.s32 %s33, %s951
          %s953 = smul.addr %s952, 32
          %s954 = scalar_lea.hbm %s4, %s953
          %s956 = sshll.u32 %s928, 4
          %s957 = int_to_ptr.vmem [resolvable:$true] %s956
          %959 = dma.vmem_to_hbm [thread:$0]  %s957, 32, %s954, %s925
        $region52: #{tpu_custom_call.1} parent=31 // pred_fallthru
          _
      $region32: #{tpu_custom_call.1} parent=5 // pred_fallthru
        _
      %p960 = scmp.le.s32.totalorder 2, %s23
      // Predicated region
      $region53: #{tpu_custom_call.1} parent=5 // pred_check
        %p961 = pneg %p960
      $region54: #{tpu_custom_call.1} parent=5 // pred_check_branch
        %963 = sbr.rel (%p961) target = $region56
      $region55: #{tpu_custom_call.1} parent=5 // pred_region
        %s964 = ssub.s32 %s23, 2
        // Predicated region
        $region57: #{tpu_custom_call.1} parent=55 // pred_check
          %p965 = pneg %p152
        $region58: #{tpu_custom_call.1} parent=55 // pred_check_branch
          %967 = sbr.rel (%p965) target = $region60
        $region59: #{tpu_custom_call.1} parent=55 // pred_region
          %s968 = sand.u32 %s137, 1
          %s969 = scalar_lea.sflag [#allocation4], %s968
          %s970 = sand.u32 %s137, 1
          %s971 = smul.addr %s970, 2
          %s972 = scalar_lea.vmem [#allocation7], %s971
          %973 = dma.done %s969, 32
        $region60: #{tpu_custom_call.1} parent=55 // pred_fallthru
          _
        // Predicated region
        $region61: #{tpu_custom_call.1} parent=55 // pred_check
          %p974 = pneg %p180
        $region62: #{tpu_custom_call.1} parent=55 // pred_check_branch
          %976 = sbr.rel (%p974) target = $region64
        $region63: #{tpu_custom_call.1} parent=55 // pred_region
          %s977 = sand.u32 %s165, 1
          %s978 = scalar_lea.sflag [#allocation9], %s977
          %s979 = sand.u32 %s165, 1
          %s980 = smul.addr %s979, 2
          %s981 = scalar_lea.vmem [#allocation8], %s980
          %982 = dma.done %s978, 32
        $region64: #{tpu_custom_call.1} parent=55 // pred_fallthru
          _
      $region56: #{tpu_custom_call.1} parent=5 // pred_fallthru
        _
    $region6: #{tpu_custom_call.1} parent=1 // loop_footer
      %s27 = sadd.s32 1, %s23
    $region7: #{tpu_custom_call.1} parent=1 // loop_footer_branch
      %22 = sbr.rel target = $region3
    $region8: #{tpu_custom_call.1} parent=1 // loop_exit
      _
    %983 = vsyncpa [#allocation3], 1
    %s984 = scalar_lea.sflag [#allocation3], 1
    %985 = vsyncpa %s984, 1
    %986 = vsyncpa [#allocation6], 1
    %s987 = scalar_lea.sflag [#allocation6], 1
    %988 = vsyncpa %s987, 1
    %989 = vsyncpa [#allocation4], 1
    %s990 = scalar_lea.sflag [#allocation4], 1
    %991 = vsyncpa %s990, 1
    %992 = vsyncpa [#allocation9], 1
    %s993 = scalar_lea.sflag [#allocation9], 1
    %994 = vsyncpa %s993, 1

</llo_original>
